<compile_context>
chip_gen: v7x
topology: tpu7x:2x2x1
jax: 0.10.0
libtpu: 0.0.40
codegen_flags: <defaults>
</compile_context>

<pallas_src>
import functools

import numpy as np
import jax
import jax.numpy as jnp
from jax.experimental import pallas as pl
from jax.experimental.pallas import tpu as pltpu


def _dup_suppression_kernel(obj_ref, pne_ref, loss_ref, *, eps):
    """Per-sample duplicate-suppression loss for one batch chunk.

    obj_ref : (BT, N, F) float32  object latents
    pne_ref : (BT, N)    float32  p(not empty) per slot (all ones if is_empty
                                  was None -> reduces to the plain mean)
    loss_ref: (BT, 1)    float32  per-sample loss
    """
    obj = obj_ref[...]
    pne = pne_ref[...]
    bt, n, _ = obj.shape

    # All pairwise dot products in one batched MXU matmul.
    gram = jnp.einsum("bif,bjf->bij", obj, obj,
                      preferred_element_type=jnp.float32)        # (BT, N, N)

    row = jax.lax.broadcasted_iota(jnp.int32, (n, n), 0)
    col = jax.lax.broadcasted_iota(jnp.int32, (n, n), 1)
    eye = (row == col).astype(jnp.float32)[None]                  # (1, N, N)
    triu = (col > row).astype(jnp.float32)[None]                  # strict upper

    # Squared norms come for free from the Gram diagonal (no 2nd pass over F).
    sq_norms = jnp.sum(gram * eye, axis=-1, keepdims=True)        # (BT, N, 1)
    norms = jnp.sqrt(sq_norms)
    denom = jnp.maximum(norms * jnp.swapaxes(norms, -1, -2), eps)
    sq_sim = (gram / denom) ** 2                                  # cos^2

    # Pair weights p_i * p_j on the strict upper triangle.
    p_pair = (pne[:, :, None] * pne[:, None, :]) * triu           # (BT, N, N)

    num = jnp.sum(jnp.sum(sq_sim * p_pair, axis=-1), axis=-1, keepdims=True)
    den = jnp.sum(jnp.sum(p_pair, axis=-1), axis=-1, keepdims=True)
    loss_ref[...] = num / den


def _pairwise_losses(objects, p_not_empty, *, eps=1e-8, block_b=64):
    """Per-sample losses [B] for objects [B, N, F] and p_not_empty [B, N]."""
    B, N, F = objects.shape
    objects = objects.astype(jnp.float32)
    p_not_empty = p_not_empty.astype(jnp.float32)

    if B <= block_b:
        bt = B                      # single kernel invocation for small batches
        pad = 0
    else:
        bt = block_b                # multiple of 8 -> valid sublane tiling
        pad = (-B) % bt
    if pad:
        # Pad with zero objects / p_not_empty = 1 -> padded rows give loss 0.
        objects = jnp.concatenate(
            [objects, jnp.zeros((pad, N, F), objects.dtype)], axis=0)
        p_not_empty = jnp.concatenate(
            [p_not_empty, jnp.ones((pad, N), p_not_empty.dtype)], axis=0)
    Bp = B + pad

    out = pl.pallas_call(
        functools.partial(_dup_suppression_kernel, eps=eps),
        out_shape=jax.ShapeDtypeStruct((Bp, 1), jnp.float32),
        grid_spec=pltpu.PrefetchScalarGridSpec(
            num_scalar_prefetch=0,
            grid=(Bp // bt,),
            in_specs=[
                pl.BlockSpec((bt, N, F), lambda b: (b, 0, 0)),
                pl.BlockSpec((bt, N), lambda b: (b, 0)),
            ],
            out_specs=pl.BlockSpec((bt, 1), lambda b: (b, 0)),
        ),
        compiler_params=pltpu.CompilerParams(
            dimension_semantics=("parallel",)),
    )(objects, p_not_empty)
    return out[:B, 0]


def latent_duplicate_suppression_loss(objects, is_empty=None, weight=1.0,
                                      eps=1e-8, block_b=64):
    """Mirrors LatentDupplicateSuppressionLoss.forward (3-D and 4-D paths)."""
    objects = jnp.asarray(objects, jnp.float32)
    if objects.ndim == 4:
        bs, n_frames, n_objects, n_features = objects.shape
        flat = objects.reshape(bs * n_frames, n_objects, n_features)
        if is_empty is not None:
            pne = 1.0 - jnp.asarray(is_empty, jnp.float32).reshape(
                bs * n_frames, n_objects)
        else:
            pne = jnp.ones((bs * n_frames, n_objects), jnp.float32)
        losses = _pairwise_losses(flat, pne, eps=eps, block_b=block_b)
        return weight * jnp.sum(losses) / (bs * n_frames)
    elif objects.ndim == 3:
        bs, n_objects, n_features = objects.shape
        if is_empty is not None:
            pne = 1.0 - jnp.asarray(is_empty, jnp.float32)
        else:
            pne = jnp.ones((bs, n_objects), jnp.float32)
        losses = _pairwise_losses(objects, pne, eps=eps, block_b=block_b)
        return weight * jnp.sum(losses) / bs
    else:
        raise ValueError("Incompatible input format.")


def _reference_loss(objects, is_empty, weight, eps=1e-8):
    """Pure numpy reference of the PyTorch forward (float64)."""
    obj = np.asarray(objects, dtype=np.float64)
    if obj.ndim == 3:
        denom = obj.shape[0]
        obj = obj[:, None]
        ie = None if is_empty is None else np.asarray(is_empty,
                                                      np.float64)[:, None]
    else:
        denom = obj.shape[0] * obj.shape[1]
        ie = None if is_empty is None else np.asarray(is_empty, np.float64)
    n = obj.shape[2]
    iu, ju = np.triu_indices(n, k=1)
    a, b = obj[:, :, iu, :], obj[:, :, ju, :]
    cos = (a * b).sum(-1) / np.maximum(
        np.linalg.norm(a, axis=-1) * np.linalg.norm(b, axis=-1), eps)
    sq = cos ** 2
    if ie is not None:
        pne = 1.0 - ie
        pp = pne[..., iu] * pne[..., ju]
        per = (sq * pp).sum(-1) / pp.sum(-1)
    else:
        per = sq.mean(-1)
    return weight * per.sum() / denom


if __name__ == "__main__":
    key = jax.random.PRNGKey(0)
    k1, k2, k3, k4, k5, k6 = jax.random.split(key, 6)

    bs, n_objects, n_features = 2, 8, 32

    # ---- 3-D path with is_empty (weighted pair aggregation) ----
    objects3 = jax.random.normal(k1, (bs, n_objects, n_features), jnp.float32)
    is_empty3 = jax.random.uniform(k2, (bs, n_objects), dtype=jnp.float32)
    loss3 = jax.block_until_ready(
        latent_duplicate_suppression_loss(objects3, is_empty3, weight=0.5))
    ref3 = _reference_loss(objects3, is_empty3, 0.5)
    assert np.isfinite(float(loss3))
    assert np.allclose(float(loss3), float(ref3), rtol=2e-2, atol=1e-5), \
        (float(loss3), float(ref3))

    # ---- 3-D path without is_empty (plain mean over pairs) ----
    loss3b = jax.block_until_ready(
        latent_duplicate_suppression_loss(objects3, None, weight=1.0))
    ref3b = _reference_loss(objects3, None, 1.0)
    assert np.allclose(float(loss3b), float(ref3b), rtol=2e-2, atol=1e-5), \
        (float(loss3b), float(ref3b))

    # ---- 4-D (video) path ----
    n_frames = 3
    objects4 = jax.random.normal(k3, (bs, n_frames, n_objects, n_features),
                                 jnp.float32)
    is_empty4 = jax.random.uniform(k4, (bs, n_frames, n_objects),
                                   dtype=jnp.float32)
    loss4 = jax.block_until_ready(
        latent_duplicate_suppression_loss(objects4, is_empty4, weight=1.0))
    ref4 = _reference_loss(objects4, is_empty4, 1.0)
    assert np.allclose(float(loss4), float(ref4), rtol=2e-2, atol=1e-5), \
        (float(loss4), float(ref4))

    # ---- chunked / padded batch path (exercises grid > 1 + padding) ----
    big_bs = 20
    objects_big = jax.random.normal(k5, (big_bs, n_objects, n_features),
                                    jnp.float32)
    is_empty_big = jax.random.uniform(k6, (big_bs, n_objects),
                                      dtype=jnp.float32)
    loss_big = jax.block_until_ready(
        latent_duplicate_suppression_loss(objects_big, is_empty_big,
                                          weight=1.0, block_b=8))
    ref_big = _reference_loss(objects_big, is_empty_big, 1.0)
    assert np.allclose(float(loss_big), float(ref_big), rtol=2e-2, atol=1e-5), \
        (float(loss_big), float(ref_big))

    print("KERNEL_OK")
</pallas_src>

<mosaic_0001>
module attributes {stable_mosaic.version = 11 : i64} {
  func.func @_dup_suppression_kernel(%arg0: i32, %arg1: memref<2x8x32xf32, #tpu.memory_space<vmem>>, %arg2: memref<2x8xf32, #tpu.memory_space<vmem>>, %arg3: memref<2x1xf32, #tpu.memory_space<vmem>>) attributes {dimension_semantics = [#tpu.dimension_semantics<parallel>], iteration_bounds = array<i64: 1>, scalar_prefetch = 0 : i64, scratch_operands = 0 : i64, tpu.core_type = #tpu.core_type<tc>, window_params = [{transform_indices = @transform_0, window_bounds = array<i64: 2, 8, 32>}, {transform_indices = @transform_1, window_bounds = array<i64: 2, 8>}, {transform_indices = @transform_2, window_bounds = array<i64: 2, 1>}]} {
    %c0 = arith.constant 0 : index
    %c0_0 = arith.constant 0 : index
    %c0_1 = arith.constant 0 : index
    %0 = vector.load %arg1[%c0, %c0_0, %c0_1] : memref<2x8x32xf32, #tpu.memory_space<vmem>>, vector<2x8x32xf32>
    %c0_2 = arith.constant 0 : index
    %c0_3 = arith.constant 0 : index
    %1 = vector.load %arg2[%c0_2, %c0_3] : memref<2x8xf32, #tpu.memory_space<vmem>>, vector<2x8xf32>
    "tpu.trace_start"() <{level = 10 : i32, message = "bif,bjf->bij"}> : () -> ()
    %cst = arith.constant dense<0.000000e+00> : vector<2x8x8xf32>
    %2 = tpu.matmul %0, %0, %cst {dimension_numbers = #tpu.dot_dimension_numbers<[2], [2], [1], [1], [0, 0, 0, 1, 1, 1], [0], [0]>} : vector<2x8x32xf32>, vector<2x8x32xf32>, vector<2x8x8xf32> -> vector<2x8x8xf32>
    "tpu.trace_stop"() : () -> ()
    %3 = tpu.iota {dimensions = array<i32: 0>} : vector<8x8xi32>
    %4 = tpu.iota {dimensions = array<i32: 1>} : vector<8x8xi32>
    %5 = arith.cmpi eq, %3, %4 : vector<8x8xi32>
    %6 = arith.extui %5 : vector<8x8xi1> to vector<8x8xi32>
    %7 = arith.sitofp %6 : vector<8x8xi32> to vector<8x8xf32>
    %8 = vector.shape_cast %7 : vector<8x8xf32> to vector<1x8x8xf32>
    %9 = arith.cmpi sgt, %4, %3 : vector<8x8xi32>
    %10 = arith.extui %9 : vector<8x8xi1> to vector<8x8xi32>
    %11 = arith.sitofp %10 : vector<8x8xi32> to vector<8x8xf32>
    %12 = vector.shape_cast %11 : vector<8x8xf32> to vector<1x8x8xf32>
    %13 = vector.broadcast %8 : vector<1x8x8xf32> to vector<2x8x8xf32>
    %14 = arith.mulf %2, %13 : vector<2x8x8xf32>
    %cst_4 = arith.constant dense<0.000000e+00> : vector<2x8xf32>
    %15 = vector.multi_reduction <add>, %14, %cst_4 [2] : vector<2x8x8xf32> to vector<2x8xf32>
    %16 = vector.shape_cast %15 : vector<2x8xf32> to vector<2x8x1xf32>
    %17 = math.sqrt %16 : vector<2x8x1xf32>
    %18 = tpu.transpose %17, [0, 2, 1] : vector<2x8x1xf32> -> vector<2x1x8xf32>
    %19 = vector.broadcast %17 : vector<2x8x1xf32> to vector<2x8x8xf32>
    %20 = vector.broadcast %18 : vector<2x1x8xf32> to vector<2x8x8xf32>
    %21 = arith.mulf %19, %20 : vector<2x8x8xf32>
    %cst_5 = arith.constant 9.99999993E-9 : f32
    %22 = vector.broadcast %cst_5 : f32 to vector<2x8x8xf32>
    %23 = arith.maximumf %21, %22 : vector<2x8x8xf32>
    %24 = arith.divf %2, %23 : vector<2x8x8xf32>
    %25 = arith.mulf %24, %24 : vector<2x8x8xf32>
    %26 = vector.shape_cast %1 : vector<2x8xf32> to vector<2x8x1xf32>
    %27 = vector.shape_cast %1 : vector<2x8xf32> to vector<2x1x8xf32>
    %28 = vector.broadcast %26 : vector<2x8x1xf32> to vector<2x8x8xf32>
    %29 = vector.broadcast %27 : vector<2x1x8xf32> to vector<2x8x8xf32>
    %30 = arith.mulf %28, %29 : vector<2x8x8xf32>
    %31 = vector.broadcast %12 : vector<1x8x8xf32> to vector<2x8x8xf32>
    %32 = arith.mulf %30, %31 : vector<2x8x8xf32>
    %33 = arith.mulf %25, %32 : vector<2x8x8xf32>
    %cst_6 = arith.constant dense<0.000000e+00> : vector<2x8xf32>
    %34 = vector.multi_reduction <add>, %33, %cst_6 [2] : vector<2x8x8xf32> to vector<2x8xf32>
    %cst_7 = arith.constant dense<0.000000e+00> : vector<2xf32>
    %35 = vector.multi_reduction <add>, %34, %cst_7 [1] : vector<2x8xf32> to vector<2xf32>
    %36 = vector.shape_cast %35 : vector<2xf32> to vector<2x1xf32>
    %cst_8 = arith.constant dense<0.000000e+00> : vector<2x8xf32>
    %37 = vector.multi_reduction <add>, %32, %cst_8 [2] : vector<2x8x8xf32> to vector<2x8xf32>
    %cst_9 = arith.constant dense<0.000000e+00> : vector<2xf32>
    %38 = vector.multi_reduction <add>, %37, %cst_9 [1] : vector<2x8xf32> to vector<2xf32>
    %39 = vector.shape_cast %38 : vector<2xf32> to vector<2x1xf32>
    %40 = arith.divf %36, %39 : vector<2x1xf32>
    %c0_10 = arith.constant 0 : index
    %c0_11 = arith.constant 0 : index
    %41 = vector.load %arg3[%c0_10, %c0_11] : memref<2x1xf32, #tpu.memory_space<vmem>>, vector<2x1xf32>
    tpu.vector_store %arg3[%c0_10, %c0_11], %40 {strides = array<i32>} : memref<2x1xf32, #tpu.memory_space<vmem>>, vector<2x1xf32>,
    return
  }
  func.func @transform_0(%arg0: i32) -> (i32, i32, i32) {
    %c0_i32 = arith.constant 0 : i32
    %c0_i32_0 = arith.constant 0 : i32
    %c0_i32_1 = arith.constant 0 : i32
    return %arg0, %c0_i32, %c0_i32_0 : i32, i32, i32
  }
  func.func @transform_1(%arg0: i32) -> (i32, i32) {
    %c0_i32 = arith.constant 0 : i32
    %c0_i32_0 = arith.constant 0 : i32
    return %arg0, %c0_i32 : i32, i32
  }
  func.func @transform_2(%arg0: i32) -> (i32, i32) {
    %c0_i32 = arith.constant 0 : i32
    %c0_i32_0 = arith.constant 0 : i32
    return %arg0, %c0_i32 : i32, i32
  }
}

</mosaic_0001>

<llo_original>
// kernel: tpu_custom_call.1
$region0: #{tpu_custom_call.1}
  #allocation0 [shape = 'u32[]', space=smem, size = 0x4, offset = 0x4, fixed_abs, tag = 'smem constant byte address 0x4 - core index']
  #allocation1 [shape = 'u32[144,128]{1,0:T(1,128)}', space=vmem, size = 0x12000, scoped, tag = 'internal scratch']
  %s0 = inlined_call_operand.hbm [shape: f32[2,8,32], index: 0, kind: input, shape index: {}]
  %s1 = inlined_call_operand.vmem [shape: f32[2,8], index: 1, kind: input, shape index: {}]
  %s2 = inlined_call_operand.vmem [shape: f32[2,1], index: 2, kind: output, shape index: {}]
  %s3 = sld [smem:[#allocation0]]
  $region22: #{tpu_custom_call.1} parent=0
    _
  %s5 = ssub.s32 1, %s3
  %s6 = scalar_select 0, %s5, %s3
  $region1: #{tpu_custom_call.1} parent=0
    #allocation2 [shape = 'u8[8192]{0}', space=vmem, size = 0x2000, scoped, tag = 'input window, operand 0, single buffered']
    #allocation3 [shape = 's32[1]{0}', space=sflag, size = 0x4, scoped, tag = 'scoped memory for tpu_custom_call.1']
    %7 = vsyncpa [#allocation3], 0
    // Predicated region
    $region2: #{tpu_custom_call.1} parent=1 // pred_check
      _
    $region3: #{tpu_custom_call.1} parent=1 // pred_check_branch
      %9 = sbr.rel (0) target = $region5
    $region4: #{tpu_custom_call.1} parent=1 // pred_region
      %s11 = ssub.s32 256, 256
      %12 = vsyncadd [#allocation3], %s11
      %s13 = sshll.u32 [#allocation2], 4
      %s14 = int_to_ptr.vmem [resolvable:$true] %s13
      %19 = dma.hbm_to_vmem [thread:$0]  %s0, 256, %s14, [#allocation3], 128, 128, 8
    $region5: #{tpu_custom_call.1} parent=1 // pred_fallthru
      _
    // Predicated region
    $region6: #{tpu_custom_call.1} parent=1 // pred_check
      _
    $region7: #{tpu_custom_call.1} parent=1 // pred_check_branch
      %21 = sbr.rel (0) target = $region9
    $region8: #{tpu_custom_call.1} parent=1 // pred_region
      _
    $region9: #{tpu_custom_call.1} parent=1 // pred_fallthru
      _
    // Predicated region
    $region10: #{tpu_custom_call.1} parent=1 // pred_check
      _
    $region11: #{tpu_custom_call.1} parent=1 // pred_check_branch
      %23 = sbr.rel (0) target = $region13
    $region12: #{tpu_custom_call.1} parent=1 // pred_region
      %24 = dma.done [#allocation3], 256
    $region13: #{tpu_custom_call.1} parent=1 // pred_fallthru
      _
    %v25 = vld [vmem:[#allocation2] sm:$0xff]
    %v26 = vld [vmem:[#allocation2 + $0x8] sm:$0xff]
    %v27 = vld [vmem:[%s1] sm:$0x3]
    %vm28 = vcmask 261120
    %v30 = vsel %vm28, %v25, 0
    %32 = vmatprep.subr.mxu0 0.0
    %33 = vmatpush1.xpose.msra.mxu0 %v30
    %34 = vmatprep.subr.mxu0 0.0
    %35 = vmatpush1.xpose.msra.mxu0 0.0
    %36 = vmatprep.subr.mxu0 0.0
    %37 = vmatpush1.xpose.msra.mxu0 0.0
    %38 = vmatprep.subr.mxu0 0.0
    %39 = vmatpush1.xpose.msra.mxu0 0.0
    %40 = vmatprep.subr.mxu0 0.0
    %41 = vmatpush1.xpose.msra.mxu0 0.0
    %42 = vmatprep.subr.mxu0 0.0
    %43 = vmatpush1.xpose.msra.mxu0 0.0
    %44 = vmatprep.subr.mxu0 0.0
    %45 = vmatpush1.xpose.msra.mxu0 0.0
    %46 = vmatprep.subr.mxu0 0.0
    %47 = vmatpush1.xpose.msra.mxu0 0.0
    %48 = vmatprep.subr.mxu0 0.0
    %49 = vmatpush1.xpose.msra.mxu0 0.0
    %50 = vmatprep.subr.mxu0 0.0
    %51 = vmatpush1.xpose.msra.mxu0 0.0
    %52 = vmatprep.subr.mxu0 0.0
    %53 = vmatpush1.xpose.msra.mxu0 0.0
    %54 = vmatprep.subr.mxu0 0.0
    %55 = vmatpush1.xpose.msra.mxu0 0.0
    %56 = vmatprep.subr.mxu0 0.0
    %57 = vmatpush1.xpose.msra.mxu0 0.0
    %58 = vmatprep.subr.mxu0 0.0
    %59 = vmatpush1.xpose.msra.mxu0 0.0
    %60 = vmatprep.subr.mxu0 0.0
    %61 = vmatpush1.xpose.msra.mxu0 0.0
    %62 = vmatprep.subr.mxu0 0.0
    %63 = vmatpush1.xpose.msra.mxu0 0.0
    %64 = vmatprep.subr.mxu0 0.0
    %65 = vmatpush1.xpose.msra.mxu0 0.0
    %66 = vmatprep.subr.mxu0 0.0
    %67 = vmatpush1.xpose.msra.mxu0 0.0
    %68 = vmatprep.subr.mxu0 0.0
    %69 = vmatpush1.xpose.msra.mxu0 0.0
    %70 = vmatprep.subr.mxu0 0.0
    %71 = vmatpush1.xpose.msra.mxu0 0.0
    %72 = vmatprep.subr.mxu0 0.0
    %73 = vmatpush1.xpose.msra.mxu0 0.0
    %74 = vmatprep.subr.mxu0 0.0
    %75 = vmatpush1.xpose.msra.mxu0 0.0
    %76 = vmatprep.subr.mxu0 0.0
    %77 = vmatpush1.xpose.msra.mxu0 0.0
    %78 = vmatprep.subr.mxu0 0.0
    %79 = vmatpush1.xpose.msra.mxu0 0.0
    %80 = vmatprep.subr.mxu0 0.0
    %81 = vmatpush1.xpose.msra.mxu0 0.0
    %82 = vmatprep.subr.mxu0 0.0
    %83 = vmatpush1.xpose.msra.mxu0 0.0
    %84 = vmatprep.subr.mxu0 0.0
    %85 = vmatpush1.xpose.msra.mxu0 0.0
    %86 = vmatprep.subr.mxu0 0.0
    %87 = vmatpush1.xpose.msra.mxu0 0.0
    %88 = vmatprep.subr.mxu0 0.0
    %89 = vmatpush1.xpose.msra.mxu0 0.0
    %90 = vmatprep.subr.mxu0 0.0
    %91 = vmatpush1.xpose.msra.mxu0 0.0
    %92 = vmatprep.subr.mxu0 0.0
    %93 = vmatpush1.xpose.msra.mxu0 0.0
    %94 = vmatprep.subr.mxu0 0.0
    %95 = vmatpush1.xpose.msra.mxu0 0.0
    %96 = vmatprep.mubr.f32.mxu0 0.0
    %97 = vmatmul.mubr.f32.gmra.mrb[0].mxu0 %v30
    %v98 = vpop.f32.mrb[0].mxu0
    %v99 = vadd.f32 0.0, %v98
    %v100 = vpop.f32.mrb[0].mxu0
    %101 = vdwg.mxu0
    %v103 = vsel %vm28, %v26, 0
    %105 = vmatprep.subr.mxu0 0.0
    %106 = vmatpush1.xpose.msra.mxu0 %v103
    %107 = vmatprep.subr.mxu0 0.0
    %108 = vmatpush1.xpose.msra.mxu0 0.0
    %109 = vmatprep.subr.mxu0 0.0
    %110 = vmatpush1.xpose.msra.mxu0 0.0
    %111 = vmatprep.subr.mxu0 0.0
    %112 = vmatpush1.xpose.msra.mxu0 0.0
    %113 = vmatprep.subr.mxu0 0.0
    %114 = vmatpush1.xpose.msra.mxu0 0.0
    %115 = vmatprep.subr.mxu0 0.0
    %116 = vmatpush1.xpose.msra.mxu0 0.0
    %117 = vmatprep.subr.mxu0 0.0
    %118 = vmatpush1.xpose.msra.mxu0 0.0
    %119 = vmatprep.subr.mxu0 0.0
    %120 = vmatpush1.xpose.msra.mxu0 0.0
    %121 = vmatprep.subr.mxu0 0.0
    %122 = vmatpush1.xpose.msra.mxu0 0.0
    %123 = vmatprep.subr.mxu0 0.0
    %124 = vmatpush1.xpose.msra.mxu0 0.0
    %125 = vmatprep.subr.mxu0 0.0
    %126 = vmatpush1.xpose.msra.mxu0 0.0
    %127 = vmatprep.subr.mxu0 0.0
    %128 = vmatpush1.xpose.msra.mxu0 0.0
    %129 = vmatprep.subr.mxu0 0.0
    %130 = vmatpush1.xpose.msra.mxu0 0.0
    %131 = vmatprep.subr.mxu0 0.0
    %132 = vmatpush1.xpose.msra.mxu0 0.0
    %133 = vmatprep.subr.mxu0 0.0
    %134 = vmatpush1.xpose.msra.mxu0 0.0
    %135 = vmatprep.subr.mxu0 0.0
    %136 = vmatpush1.xpose.msra.mxu0 0.0
    %137 = vmatprep.subr.mxu0 0.0
    %138 = vmatpush1.xpose.msra.mxu0 0.0
    %139 = vmatprep.subr.mxu0 0.0
    %140 = vmatpush1.xpose.msra.mxu0 0.0
    %141 = vmatprep.subr.mxu0 0.0
    %142 = vmatpush1.xpose.msra.mxu0 0.0
    %143 = vmatprep.subr.mxu0 0.0
    %144 = vmatpush1.xpose.msra.mxu0 0.0
    %145 = vmatprep.subr.mxu0 0.0
    %146 = vmatpush1.xpose.msra.mxu0 0.0
    %147 = vmatprep.subr.mxu0 0.0
    %148 = vmatpush1.xpose.msra.mxu0 0.0
    %149 = vmatprep.subr.mxu0 0.0
    %150 = vmatpush1.xpose.msra.mxu0 0.0
    %151 = vmatprep.subr.mxu0 0.0
    %152 = vmatpush1.xpose.msra.mxu0 0.0
    %153 = vmatprep.subr.mxu0 0.0
    %154 = vmatpush1.xpose.msra.mxu0 0.0
    %155 = vmatprep.subr.mxu0 0.0
    %156 = vmatpush1.xpose.msra.mxu0 0.0
    %157 = vmatprep.subr.mxu0 0.0
    %158 = vmatpush1.xpose.msra.mxu0 0.0
    %159 = vmatprep.subr.mxu0 0.0
    %160 = vmatpush1.xpose.msra.mxu0 0.0
    %161 = vmatprep.subr.mxu0 0.0
    %162 = vmatpush1.xpose.msra.mxu0 0.0
    %163 = vmatprep.subr.mxu0 0.0
    %164 = vmatpush1.xpose.msra.mxu0 0.0
    %165 = vmatprep.subr.mxu0 0.0
    %166 = vmatpush1.xpose.msra.mxu0 0.0
    %167 = vmatprep.subr.mxu0 0.0
    %168 = vmatpush1.xpose.msra.mxu0 0.0
    %169 = vmatprep.mubr.f32.mxu0 0.0
    %170 = vmatmul.mubr.f32.gmra.mrb[0].mxu0 %v103
    %v171 = vpop.f32.mrb[0].mxu0
    %v172 = vadd.f32 0.0, %v171
    %v173 = vpop.f32.mrb[0].mxu0
    %174 = vdwg.mxu0
    %v175 = vlaneseq
    %v176 = vshrl.u32 %v175, 7
    %v177 = vlaneseq
    %v178 = vand.u32 %v177, 127
    %vm179 = vcmp.eq.s32.totalorder %v176, %v178
    %v180 = vsel %vm179, 1, 0
    %v181 = vcvt.s32.f32 %v180
    %vm182 = vcmp.gt.s32.totalorder %v178, %v176
    %v183 = vsel %vm182, 1, 0
    %v184 = vcvt.s32.f32 %v183
    %v185 = vmul.f32 %v99, %v181
    %v186 = vmul.f32 %v172, %v181
    %vm187 = vcmask 64512
    %v188 = vsel %vm187, %v185, 0.0
    %189 = vadd.xlane.f32.xlu0 %v188
    %v190 = vpop.xlane.xlu0 %189
    %v191 = vsel %vm187, %v186, 0.0
    %192 = vadd.xlane.f32.xlu0 %v191
    %v193 = vpop.xlane.xlu0 %192
    %v194 = vrsqrt.pop %v190
    %v195 = vmul.f32 %v190, %v194
    %vm196 = vcmp.eq.f32.partialorder %v190, inf
    %v197 = vsel %vm196, %v190, %v195
    %vm198 = vcmp.eq.f32.partialorder %v190, 0.0
    %v199 = vand.u32 %v190, 2147483648
    %v200 = vsel %vm198, %v199, %v197
    %v201 = vrsqrt.pop %v193
    %v202 = vmul.f32 %v193, %v201
    %vm203 = vcmp.eq.f32.partialorder %v193, inf
    %v204 = vsel %vm203, %v193, %v202
    %vm205 = vcmp.eq.f32.partialorder %v193, 0.0
    %v206 = vand.u32 %v193, 2147483648
    %v207 = vsel %vm205, %v206, %v204
    %208 = vxpose.xlu0.b32.start [1/16] %v200, 128
    %209 = vxpose.xlu0.b32.cont [2/16] 0.0, 128
    %210 = vxpose.xlu0.b32.cont [3/16] 0.0, 128
    %211 = vxpose.xlu0.b32.cont [4/16] 0.0, 128
    %212 = vxpose.xlu0.b32.cont [5/16] 0.0, 128
    %213 = vxpose.xlu0.b32.cont [6/16] 0.0, 128
    %214 = vxpose.xlu0.b32.cont [7/16] 0.0, 128
    %215 = vxpose.xlu0.b32.cont [8/16] 0.0, 128
    %216 = vxpose.xlu0.b32.cont [9/16] 0.0, 128
    %217 = vxpose.xlu0.b32.cont [10/16] 0.0, 128
    %218 = vxpose.xlu0.b32.cont [11/16] 0.0, 128
    %219 = vxpose.xlu0.b32.cont [12/16] 0.0, 128
    %220 = vxpose.xlu0.b32.cont [13/16] 0.0, 128
    %221 = vxpose.xlu0.b32.cont [14/16] 0.0, 128
    %222 = vxpose.xlu0.b32.cont [15/16] 0.0, 128
    %223 = vxpose.xlu0.b32.end [16/16] 0.0, 128
    %v224 = vpop.trf.xlu0
    %v225 = vpop.trf.xlu0
    %v226 = vpop.trf.xlu0
    %v227 = vpop.trf.xlu0
    %v228 = vpop.trf.xlu0
    %v229 = vpop.trf.xlu0
    %v230 = vpop.trf.xlu0
    %v231 = vpop.trf.xlu0
    %v232 = vpop.trf.xlu0
    %v233 = vpop.trf.xlu0
    %v234 = vpop.trf.xlu0
    %v235 = vpop.trf.xlu0
    %v236 = vpop.trf.xlu0
    %v237 = vpop.trf.xlu0
    %v238 = vpop.trf.xlu0
    %v239 = vpop.trf.xlu0
    %240 = vxpose.xlu0.b32.start [1/16] %v207, 128
    %241 = vxpose.xlu0.b32.cont [2/16] 0.0, 128
    %242 = vxpose.xlu0.b32.cont [3/16] 0.0, 128
    %243 = vxpose.xlu0.b32.cont [4/16] 0.0, 128
    %244 = vxpose.xlu0.b32.cont [5/16] 0.0, 128
    %245 = vxpose.xlu0.b32.cont [6/16] 0.0, 128
    %246 = vxpose.xlu0.b32.cont [7/16] 0.0, 128
    %247 = vxpose.xlu0.b32.cont [8/16] 0.0, 128
    %248 = vxpose.xlu0.b32.cont [9/16] 0.0, 128
    %249 = vxpose.xlu0.b32.cont [10/16] 0.0, 128
    %250 = vxpose.xlu0.b32.cont [11/16] 0.0, 128
    %251 = vxpose.xlu0.b32.cont [12/16] 0.0, 128
    %252 = vxpose.xlu0.b32.cont [13/16] 0.0, 128
    %253 = vxpose.xlu0.b32.cont [14/16] 0.0, 128
    %254 = vxpose.xlu0.b32.cont [15/16] 0.0, 128
    %255 = vxpose.xlu0.b32.end [16/16] 0.0, 128
    %v256 = vpop.trf.xlu0
    %v257 = vpop.trf.xlu0
    %v258 = vpop.trf.xlu0
    %v259 = vpop.trf.xlu0
    %v260 = vpop.trf.xlu0
    %v261 = vpop.trf.xlu0
    %v262 = vpop.trf.xlu0
    %v263 = vpop.trf.xlu0
    %v264 = vpop.trf.xlu0
    %v265 = vpop.trf.xlu0
    %v266 = vpop.trf.xlu0
    %v267 = vpop.trf.xlu0
    %v268 = vpop.trf.xlu0
    %v269 = vpop.trf.xlu0
    %v270 = vpop.trf.xlu0
    %v271 = vpop.trf.xlu0
    %v272 = vlaneseq
    %v273 = vshrl.u32 %v272, 7
    %v274 = vsub.s32 0, %v273
    %v275 = vrot.slane %v224, %v274
    %v276 = vlaneseq
    %v277 = vshrl.u32 %v276, 7
    %v278 = vsub.s32 0, %v277
    %v279 = vrot.slane %v256, %v278
    %v280 = vmul.f32 %v200, %v275
    %v281 = vmul.f32 %v207, %v279
    %v282 = vmax.f32 %v280, 1e-08
    %v283 = vmax.f32 %v281, 1e-08
    %v284 = vrcp.pop %v282
    %v285 = vmul.f32 %v99, %v284
    %v286 = vrcp.pop %v283
    %v287 = vmul.f32 %v172, %v286
    %v288 = vmul.f32 %v285, %v285
    %v289 = vmul.f32 %v287, %v287
    %v290 = vlaneseq
    %v291 = vshrl.u32 %v290, 7
    %v292 = vsub.s32 0, %v291
    %v293 = vrot.slane %v27, %v292
    %295 = vbcast.lane.b32.xlu0 %v293, 256
    %v296 = vpop.permute.xlu0 %295
    %v297 = vlaneseq
    %v298 = vshrl.u32 %v297, 7
    %v299 = vsub.s32 1, %v298
    %v300 = vrot.slane %v27, %v299
    %302 = vbcast.lane.b32.xlu0 %v300, 256
    %v303 = vpop.permute.xlu0 %302
    %v306 = vunpack.c.l.s4 1966171168
    %v307 = vunpack.c.0.s8 %v306
    %v308 = vlaneseq
    %v309 = vshrl.u32 %v308, 7
    %v310 = vsub.s32 %v307, %v309
    %v311 = vrot.slane %v27, %v310
    %v312 = vcombine.high %v311, %v311
    %v314 = vunpack.c.l.s4 1966171168
    %v315 = vunpack.c.0.s8 %v314
    %v316 = vlaneseq
    %v317 = vshrl.u32 %v316, 7
    %v318 = vsub.s32 %v315, %v317
    %v319 = vrot.slane %v311, %v318
    %v321 = vunpack.c.l.s4 1966171168
    %v322 = vunpack.c.0.s8 %v321
    %v323 = vlaneseq
    %v324 = vshrl.u32 %v323, 7
    %v325 = vsub.s32 %v322, %v324
    %v326 = vrot.slane %v312, %v325
    %v327 = vlaneseq
    %v328 = vshrl.u32 %v327, 7
    %v329 = vsub.s32 0, %v328
    %v330 = vrot.slane %v319, %v329
    %v331 = vlaneseq
    %v332 = vshrl.u32 %v331, 7
    %v333 = vsub.s32 0, %v332
    %v334 = vrot.slane %v326, %v333
    %v337 = vmul.f32 %v296, %v330
    %v338 = vmul.f32 %v303, %v334
    %v339 = vmul.f32 %v337, %v184
    %v340 = vmul.f32 %v338, %v184
    %v341 = vmul.f32 %v288, %v339
    %v342 = vmul.f32 %v289, %v340
    %v343 = vsel %vm187, %v341, 0.0
    %344 = vadd.xlane.f32.xlu0 %v343
    %v345 = vpop.xlane.xlu0 %344
    %v346 = vsel %vm187, %v342, 0.0
    %347 = vadd.xlane.f32.xlu0 %v346
    %v348 = vpop.xlane.xlu0 %347
    %v351 = vlaneseq
    %v352 = vshrl.u32 %v351, 7
    %v353 = vsub.s32 %v178, %v352
    %v354 = vrot.slane %v345, %v353
    %v355 = vlaneseq
    %v356 = vshrl.u32 %v355, 7
    %v357 = vsub.s32 %v178, %v356
    %v358 = vrot.slane %v348, %v357
    %vm359 = vcmask 1041409
    %v360 = vsel %vm359, %v358, %v354
    %vm362 = vcmask 58368
    %v363 = vsel %vm362, %v360, 0.0
    %364 = vadd.xlane.f32.xlu0 %v363
    %v365 = vpop.xlane.xlu0 %364
    %v366 = vsel %vm187, %v339, 0.0
    %367 = vadd.xlane.f32.xlu0 %v366
    %v368 = vpop.xlane.xlu0 %367
    %v369 = vsel %vm187, %v340, 0.0
    %370 = vadd.xlane.f32.xlu0 %v369
    %v371 = vpop.xlane.xlu0 %370
    %v374 = vlaneseq
    %v375 = vshrl.u32 %v374, 7
    %v376 = vsub.s32 %v178, %v375
    %v377 = vrot.slane %v368, %v376
    %v378 = vlaneseq
    %v379 = vshrl.u32 %v378, 7
    %v380 = vsub.s32 %v178, %v379
    %v381 = vrot.slane %v371, %v380
    %v382 = vsel %vm359, %v381, %v377
    %v384 = vsel %vm362, %v382, 0.0
    %385 = vadd.xlane.f32.xlu0 %v384
    %v386 = vpop.xlane.xlu0 %385
    %v387 = vrcp.pop %v386
    %v388 = vmul.f32 %v365, %v387
    %vm389 = vcmask 1024
    %390 = vst.msk [vmem:[%s2] sm:$0x3] %vm389, %v388
    // Predicated region
    $region14: #{tpu_custom_call.1} parent=1 // pred_check
      _
    $region15: #{tpu_custom_call.1} parent=1 // pred_check_branch
      %392 = sbr.rel (0) target = $region17
    $region16: #{tpu_custom_call.1} parent=1 // pred_region
      _
    $region17: #{tpu_custom_call.1} parent=1 // pred_fallthru
      _
    // Predicated region
    $region18: #{tpu_custom_call.1} parent=1 // pred_check
      _
    $region19: #{tpu_custom_call.1} parent=1 // pred_check_branch
      %394 = sbr.rel (0) target = $region21
    $region20: #{tpu_custom_call.1} parent=1 // pred_region
      _
    $region21: #{tpu_custom_call.1} parent=1 // pred_fallthru
      _
    %395 = vsyncpa [#allocation3], 1

</llo_original>
